<compile_context>
chip_gen: v7x
topology: tpu7x:2x2x1
jax: 0.10.0
libtpu: 0.0.40
codegen_flags: <defaults>
</compile_context>

<pallas_src>
import jax
import jax.numpy as jnp
from jax.experimental import pallas as pl
from jax.experimental.pallas import tpu as pltpu

HIDDEN = 32      # hidden_size
OUTPUT = 64      # output_size (vocab)
MAXLEN = 16      # max_length
DROPOUT_P = 0.1  # forward emulates eval() -> dropout is identity

_LANE = 128                 # lane width of one vreg
_W_LANES = 3 * _LANE        # packed 2H-row weight slab: lstm | attn | comb
_BIAS_LANES = 4 * _LANE     # packed-bias buffer: 4 slots of 128 lanes
_OUT_LANES = 2 * _LANE      # packed per-step output row


def _decoder_kernel(
    tok_ref,      # SMEM (T,) int32 : token ids (teacher forcing)
    emb_ref,      # VMEM (V, H)     : embedding table
    enc_hc_ref,   # VMEM (L+2, H)   : [encoder_outputs ; h0 ; c0]
    w_eh_ref,     # VMEM (2H, 384)  : packed [lstm(0:4H) | attn(128:128+L) | comb(256:256+H)]
    w_out_ref,    # VMEM (H, V)     : output projection, (in, out) layout
    bias_ref,     # VMEM (1, 512)   : packed biases (128-lane-aligned slots)
    out_ref,      # VMEM OUT (T, 256): packed [logp | h | c | attn | pad] per step
):
    H = HIDDEN
    V = emb_ref.shape[0]
    L = enc_hc_ref.shape[0] - 2
    T = tok_ref.shape[0]

    # Packed biases; every slot starts on a 128-lane (vreg) boundary.
    b_lstm = bias_ref[:, 0 * _LANE:0 * _LANE + 4 * H]   # b_ih + b_hh, (1, 4H)
    b_out = bias_ref[:, 1 * _LANE:1 * _LANE + V]        # (1, V)
    b_comb = bias_ref[:, 2 * _LANE:2 * _LANE + H]       # (1, H)
    b_attn = bias_ref[:, 3 * _LANE:3 * _LANE + L]       # (1, L)

    enc = enc_hc_ref[0:L, :]            # (L, H)  encoder outputs
    h = enc_hc_ref[L:L + 1, :]          # (1, H)  initial hidden state
    c = enc_hc_ref[L + 1:L + 2, :]      # (1, H)  initial cell state

    # Recurrence unrolled at trace time; h/c live in vregs (no scratch, no
    # per-step state DMAs).
    # TODO(synk): for very long sequences, switch back to a grid=(T,) /
    #             fori_loop variant to bound unrolled code size.
    for t in range(T):
        # embedded = embedding(input).view(1, 1, -1); dropout identity (eval).
        # TODO(synk): training-mode dropout (p=DROPOUT_P) not applied.
        tok = jnp.clip(tok_ref[t], 0, V - 1)            # guard OOB token ids
        embedded = emb_ref[pl.ds(tok, 1), :]            # (1, H) dynamic row gather

        # attention_weights = softmax(Linear(cat(embedded, hidden)), dim=1)
        eh = jnp.concatenate([embedded, h], axis=1)     # (1, 2H)
        attn_logits = jnp.dot(eh, w_eh_ref[:, _LANE:_LANE + L],
                              preferred_element_type=jnp.float32) + b_attn
        attn_logits = attn_logits - jnp.max(attn_logits, axis=1, keepdims=True)
        attn_exp = jnp.exp(attn_logits)
        attn_w = attn_exp * pl.reciprocal(
            jnp.sum(attn_exp, axis=1, keepdims=True), approx=True)   # (1, L)

        # attention_applied = bmm(attn_w, encoder_outputs)  (batch of 1)
        attn_applied = jnp.dot(attn_w, enc,
                               preferred_element_type=jnp.float32)   # (1, H)

        # output = relu(attention_combine(cat(embedded, attention_applied)))
        ea = jnp.concatenate([embedded, attn_applied], axis=1)       # (1, 2H)
        x = jnp.maximum(
            jnp.dot(ea, w_eh_ref[:, 2 * _LANE:2 * _LANE + H],
                    preferred_element_type=jnp.float32) + b_comb, 0.0)  # (1, H)

        # Single-step LSTM cell, one fused (1, 2H) @ (2H, 4H=128) matmul.
        # PyTorch gate order: i, f, g, o.
        xh = jnp.concatenate([x, h], axis=1)                          # (1, 2H)
        gates = jnp.dot(xh, w_eh_ref[:, 0:4 * H],
                        preferred_element_type=jnp.float32) + b_lstm  # (1, 4H)
        sig = jax.nn.sigmoid(gates)   # full 128-lane row on the EUP
        tnh = jnp.tanh(gates)         # full 128-lane row on the EUP
        i_g = sig[:, 0:H]
        f_g = sig[:, H:2 * H]
        g_g = tnh[:, 2 * H:3 * H]
        o_g = sig[:, 3 * H:4 * H]
        c = f_g * c + i_g * g_g
        h = o_g * jnp.tanh(c)

        # output = log_softmax(out(h), dim=1)
        logits = jnp.dot(h, w_out_ref[...],
                         preferred_element_type=jnp.float32) + b_out  # (1, V)
        shifted = logits - jnp.max(logits, axis=1, keepdims=True)
        logp = shifted - jnp.log(jnp.sum(jnp.exp(shifted), axis=1, keepdims=True))

        # Lane-dense packed row: [logp | h | c | attn | zero pad].  The whole
        # (T, 256) output buffer is written back to HBM once at kernel end.
        pad = jnp.zeros((1, _OUT_LANES - (V + 2 * H + L)), jnp.float32)
        out_ref[pl.ds(t, 1), :] = jnp.concatenate([logp, h, c, attn_w, pad],
                                                  axis=1)


def init_params(key, hidden=HIDDEN, output=OUTPUT, max_length=MAXLEN):
    """Deterministic synthetic parameters, matching the nn.Module shapes."""
    ks = jax.random.split(key, 11)
    u = lambda k, shape, s: jax.random.uniform(k, shape, jnp.float32, -s, s)
    return {
        "embedding": jax.random.normal(ks[0], (output, hidden), jnp.float32),
        # nn.Linear(hidden*2, max_length): weight (L, 2H), bias (L,)
        "attn_w": u(ks[1], (max_length, 2 * hidden), 0.2),
        "attn_b": u(ks[2], (max_length,), 0.2),
        # nn.Linear(hidden*2, hidden)
        "comb_w": u(ks[3], (hidden, 2 * hidden), 0.2),
        "comb_b": u(ks[4], (hidden,), 0.2),
        # nn.LSTM(hidden, hidden): weight_ih (4H, H), weight_hh (4H, H)
        "lstm_w_ih": u(ks[5], (4 * hidden, hidden), 0.2),
        "lstm_w_hh": u(ks[6], (4 * hidden, hidden), 0.2),
        "lstm_b_ih": u(ks[7], (4 * hidden,), 0.2),
        "lstm_b_hh": u(ks[8], (4 * hidden,), 0.2),
        # nn.Linear(hidden, output)
        "out_w": u(ks[9], (output, hidden), 0.2),
        "out_b": u(ks[10], (output,), 0.2),
    }


def _prepare_operands(params):
    """Wrapper glue: fuse/transpose weights to (in,out), pack into few arrays."""
    H, V, L = HIDDEN, OUTPUT, MAXLEN
    assert 4 * H <= _LANE and V <= _LANE and H <= _LANE and L <= _LANE
    assert V + 2 * H + L <= _OUT_LANES
    f32 = jnp.float32
    # NOTE: weights could be cast to bf16 (f32 accumulation kept via
    # preferred_element_type) to halve the one-time weight DMA; kept f32 here
    # so the numerical check against the f32 reference stays tight.
    emb = params["embedding"].astype(f32)                              # (V, H)
    w_lstm = jnp.concatenate([params["lstm_w_ih"].T,
                              params["lstm_w_hh"].T], axis=0).astype(f32)  # (2H, 4H)
    w_attn = params["attn_w"].T.astype(f32)                            # (2H, L)
    w_comb = params["comb_w"].T.astype(f32)                            # (2H, H)
    w_out = params["out_w"].T.astype(f32)                              # (H, V)

    # One lane-dense 2H-row weight slab; every slot starts on a 128-lane
    # boundary so in-kernel slices are free aligned views.
    w_eh = jnp.zeros((2 * H, _W_LANES), f32)
    w_eh = w_eh.at[:, 0:4 * H].set(w_lstm)
    w_eh = w_eh.at[:, _LANE:_LANE + L].set(w_attn)
    w_eh = w_eh.at[:, 2 * _LANE:2 * _LANE + H].set(w_comb)

    bias = jnp.zeros((1, _BIAS_LANES), f32)
    bias = bias.at[0, 0:4 * H].set(params["lstm_b_ih"] + params["lstm_b_hh"])
    bias = bias.at[0, _LANE:_LANE + V].set(params["out_b"])
    bias = bias.at[0, 2 * _LANE:2 * _LANE + H].set(params["comb_b"])
    bias = bias.at[0, 3 * _LANE:3 * _LANE + L].set(params["attn_b"])
    return emb, w_eh, w_out, bias


@jax.jit
def attention_decoder_decode(params, tokens, hidden, context, encoder_outputs):
    """Run T teacher-forced decoder steps fused into one pallas_call invocation.

    tokens: (T,) int32; hidden/context: (1,1,H) f32; encoder_outputs: (L,H) f32.
    Returns (logp (T,V), (h_T (1,1,H), c_T (1,1,H)), attn (T,L)).
    """
    H, V, L = HIDDEN, OUTPUT, MAXLEN
    T = tokens.shape[0]
    emb, w_eh, w_out, bias = _prepare_operands(params)
    enc_hc = jnp.concatenate(
        [encoder_outputs.astype(jnp.float32),
         hidden.reshape(1, H).astype(jnp.float32),
         context.reshape(1, H).astype(jnp.float32)], axis=0)          # (L+2, H)

    packed = pl.pallas_call(
        _decoder_kernel,
        out_shape=jax.ShapeDtypeStruct((T, _OUT_LANES), jnp.float32),
        in_specs=[
            pl.BlockSpec(memory_space=pltpu.MemorySpace.SMEM),   # token ids
            pl.BlockSpec(memory_space=pltpu.MemorySpace.VMEM),   # embedding
            pl.BlockSpec(memory_space=pltpu.MemorySpace.VMEM),   # enc | h0 | c0
            pl.BlockSpec(memory_space=pltpu.MemorySpace.VMEM),   # packed 2H weights
            pl.BlockSpec(memory_space=pltpu.MemorySpace.VMEM),   # out-proj weight
            pl.BlockSpec(memory_space=pltpu.MemorySpace.VMEM),   # packed biases
        ],
        out_specs=pl.BlockSpec(memory_space=pltpu.MemorySpace.VMEM),
    )(tokens.astype(jnp.int32), emb, enc_hc, w_eh, w_out, bias)

    logp = packed[:, 0:V]
    h_seq = packed[:, V:V + H]
    c_seq = packed[:, V + H:V + 2 * H]
    attn = packed[:, V + 2 * H:V + 2 * H + L]
    h_T = h_seq[-1].reshape(1, 1, H)
    c_T = c_seq[-1].reshape(1, 1, H)
    return logp, (h_T, c_T), attn


def attention_decoder_forward(params, token, hidden, context, encoder_outputs):
    """Single decoder step — exactly the PyTorch module's forward() (T == 1)."""
    return attention_decoder_decode(
        params, token.reshape(1).astype(jnp.int32),
        hidden, context, encoder_outputs)


# ----------------------------- pure-JAX reference -----------------------------

def reference_forward(params, token, hidden, context, encoder_outputs):
    """Pure-JAX reference mirroring the PyTorch forward (eval-mode dropout)."""
    H = HIDDEN
    embedded = params["embedding"][token[0]][None, :]                 # (1, H)
    h_prev = hidden.reshape(1, H)
    c_prev = context.reshape(1, H)
    cat1 = jnp.concatenate([embedded, h_prev], axis=1)
    attn_w = jax.nn.softmax(cat1 @ params["attn_w"].T + params["attn_b"], axis=1)
    attn_applied = attn_w @ encoder_outputs
    cat2 = jnp.concatenate([embedded, attn_applied], axis=1)
    x = jax.nn.relu(cat2 @ params["comb_w"].T + params["comb_b"])
    gates = (x @ params["lstm_w_ih"].T + params["lstm_b_ih"]
             + h_prev @ params["lstm_w_hh"].T + params["lstm_b_hh"])
    i_g = jax.nn.sigmoid(gates[:, 0:H])
    f_g = jax.nn.sigmoid(gates[:, H:2 * H])
    g_g = jnp.tanh(gates[:, 2 * H:3 * H])
    o_g = jax.nn.sigmoid(gates[:, 3 * H:4 * H])
    c_new = f_g * c_prev + i_g * g_g
    h_new = o_g * jnp.tanh(c_new)
    logp = jax.nn.log_softmax(h_new @ params["out_w"].T + params["out_b"], axis=1)
    return logp, (h_new.reshape(1, 1, H), c_new.reshape(1, 1, H)), attn_w


def reference_decode(params, tokens, hidden, context, encoder_outputs):
    logps, attns = [], []
    h, c = hidden, context
    for t in range(tokens.shape[0]):
        logp, (h, c), attn = reference_forward(
            params, tokens[t:t + 1], h, c, encoder_outputs)
        logps.append(logp)
        attns.append(attn)
    return jnp.concatenate(logps, 0), (h, c), jnp.concatenate(attns, 0)


if __name__ == "__main__":
    key = jax.random.PRNGKey(0)
    k_par, k_h, k_c, k_enc = jax.random.split(key, 4)

    params = init_params(k_par)
    hidden = 0.1 * jax.random.normal(k_h, (1, 1, HIDDEN), jnp.float32)    # previous h
    context = 0.1 * jax.random.normal(k_c, (1, 1, HIDDEN), jnp.float32)   # previous c
    encoder_outputs = jax.random.normal(k_enc, (MAXLEN, HIDDEN), jnp.float32)

    # Tolerances are 1e-3-ish because the in-kernel softmax uses the EUP
    # approximate reciprocal (rel. error ~2^-12); real bugs show up at >=1e-1.

    # --- single step: the module's forward() ---
    token = jnp.array([7], dtype=jnp.int32)
    logp, (h1, c1), attn = attention_decoder_forward(
        params, token, hidden, context, encoder_outputs)
    jax.block_until_ready((logp, h1, c1, attn))
    r_logp, (r_h, r_c), r_attn = reference_forward(
        params, token, hidden, context, encoder_outputs)
    assert logp.shape == (1, OUTPUT) and attn.shape == (1, MAXLEN)
    assert h1.shape == (1, 1, HIDDEN) and c1.shape == (1, 1, HIDDEN)
    for a, b in ((logp, r_logp), (h1, r_h), (c1, r_c), (attn, r_attn)):
        assert jnp.allclose(a, b, atol=2e-3, rtol=2e-3), "single-step mismatch"

    # --- fused multi-step decode: T steps in ONE pallas_call invocation ---
    T = 8
    tokens = jnp.array([7, 3, 0, 12, 63, 5, 41, 20], dtype=jnp.int32)
    logp_seq, (hT, cT), attn_seq = attention_decoder_decode(
        params, tokens, hidden, context, encoder_outputs)
    jax.block_until_ready((logp_seq, hT, cT, attn_seq))
    r_logp_seq, (r_hT, r_cT), r_attn_seq = reference_decode(
        params, tokens, hidden, context, encoder_outputs)
    assert logp_seq.shape == (T, OUTPUT) and attn_seq.shape == (T, MAXLEN)
    assert hT.shape == (1, 1, HIDDEN) and cT.shape == (1, 1, HIDDEN)
    for a, b in ((logp_seq, r_logp_seq), (hT, r_hT), (cT, r_cT),
                 (attn_seq, r_attn_seq)):
        assert jnp.allclose(a, b, atol=5e-3, rtol=5e-3), "fused decode mismatch"

    print("KERNEL_OK")
</pallas_src>

<mosaic_0001>
module attributes {stable_mosaic.version = 11 : i64} {
  func.func @_decoder_kernel(%arg0: memref<1xi32, #tpu.memory_space<smem>>, %arg1: memref<64x32xf32, #tpu.memory_space<vmem>>, %arg2: memref<18x32xf32, #tpu.memory_space<vmem>>, %arg3: memref<64x384xf32, #tpu.memory_space<vmem>>, %arg4: memref<32x64xf32, #tpu.memory_space<vmem>>, %arg5: memref<1x512xf32, #tpu.memory_space<vmem>>, %arg6: memref<1x256xf32, #tpu.memory_space<vmem>>) attributes {dimension_semantics = [], scalar_prefetch = 0 : i64, scratch_operands = 0 : i64, tpu.core_type = #tpu.core_type<tc>} {
    %c0 = arith.constant 0 : index
    %c0_0 = arith.constant 0 : index
    %0 = vector.load %arg5[%c0, %c0_0] : memref<1x512xf32, #tpu.memory_space<vmem>>, vector<1x128xf32>
    %c0_1 = arith.constant 0 : index
    %c128 = arith.constant 128 : index
    %1 = vector.load %arg5[%c0_1, %c128] : memref<1x512xf32, #tpu.memory_space<vmem>>, vector<1x64xf32>
    %c0_2 = arith.constant 0 : index
    %c256 = arith.constant 256 : index
    %2 = vector.load %arg5[%c0_2, %c256] : memref<1x512xf32, #tpu.memory_space<vmem>>, vector<1x32xf32>
    %c0_3 = arith.constant 0 : index
    %c384 = arith.constant 384 : index
    %3 = vector.load %arg5[%c0_3, %c384] : memref<1x512xf32, #tpu.memory_space<vmem>>, vector<1x16xf32>
    %c0_4 = arith.constant 0 : index
    %c0_5 = arith.constant 0 : index
    %4 = vector.load %arg2[%c0_4, %c0_5] : memref<18x32xf32, #tpu.memory_space<vmem>>, vector<16x32xf32>
    %c16 = arith.constant 16 : index
    %c0_6 = arith.constant 0 : index
    %5 = vector.load %arg2[%c16, %c0_6] : memref<18x32xf32, #tpu.memory_space<vmem>>, vector<1x32xf32>
    %c17 = arith.constant 17 : index
    %c0_7 = arith.constant 0 : index
    %6 = vector.load %arg2[%c17, %c0_7] : memref<18x32xf32, #tpu.memory_space<vmem>>, vector<1x32xf32>
    %c0_8 = arith.constant 0 : index
    %7 = memref.load %arg0[%c0_8] : memref<1xi32, #tpu.memory_space<smem>>
    %c0_i32 = arith.constant 0 : i32
    %c63_i32 = arith.constant 63 : i32
    %8 = arith.maxsi %c0_i32, %7 : i32
    %9 = arith.minsi %c63_i32, %8 : i32
    %10 = arith.index_cast %9 : i32 to index
    %c0_9 = arith.constant 0 : index
    %11 = vector.load %arg1[%10, %c0_9] : memref<64x32xf32, #tpu.memory_space<vmem>>, vector<1x32xf32>
    %12 = tpu.concatenate %11, %5 in 1 : vector<1x32xf32>, vector<1x32xf32> -> vector<1x64xf32>
    %c0_10 = arith.constant 0 : index
    %c128_11 = arith.constant 128 : index
    %13 = vector.load %arg3[%c0_10, %c128_11] : memref<64x384xf32, #tpu.memory_space<vmem>>, vector<64x16xf32>
    %cst = arith.constant dense<0.000000e+00> : vector<1x16xf32>
    %14 = tpu.matmul %12, %13, %cst {dimension_numbers = #tpu.dot_dimension_numbers<[1], [0], [0], [1], [0, 0, 1, 1], [], []>} : vector<1x64xf32>, vector<64x16xf32>, vector<1x16xf32> -> vector<1x16xf32>
    %15 = arith.addf %14, %3 : vector<1x16xf32>
    %cst_12 = arith.constant dense<0xFF800000> : vector<1xf32>
    %16 = vector.multi_reduction <maximumf>, %15, %cst_12 [1] : vector<1x16xf32> to vector<1xf32>
    %17 = vector.shape_cast %16 : vector<1xf32> to vector<1x1xf32>
    %18 = vector.broadcast %17 : vector<1x1xf32> to vector<1x16xf32>
    %19 = arith.subf %15, %18 : vector<1x16xf32>
    %20 = math.exp %19 : vector<1x16xf32>
    %cst_13 = arith.constant dense<0.000000e+00> : vector<1xf32>
    %21 = vector.multi_reduction <add>, %20, %cst_13 [1] : vector<1x16xf32> to vector<1xf32>
    %22 = vector.shape_cast %21 : vector<1xf32> to vector<1x1xf32>
    %23 = tpu.reciprocal %22 {approx = true} : vector<1x1xf32> -> vector<1x1xf32>
    %24 = vector.broadcast %23 : vector<1x1xf32> to vector<1x16xf32>
    %25 = arith.mulf %20, %24 : vector<1x16xf32>
    %cst_14 = arith.constant dense<0.000000e+00> : vector<1x32xf32>
    %26 = tpu.matmul %25, %4, %cst_14 {dimension_numbers = #tpu.dot_dimension_numbers<[1], [0], [0], [1], [0, 0, 1, 1], [], []>} : vector<1x16xf32>, vector<16x32xf32>, vector<1x32xf32> -> vector<1x32xf32>
    %27 = tpu.concatenate %11, %26 in 1 : vector<1x32xf32>, vector<1x32xf32> -> vector<1x64xf32>
    %c0_15 = arith.constant 0 : index
    %c256_16 = arith.constant 256 : index
    %28 = vector.load %arg3[%c0_15, %c256_16] : memref<64x384xf32, #tpu.memory_space<vmem>>, vector<64x32xf32>
    %cst_17 = arith.constant dense<0.000000e+00> : vector<1x32xf32>
    %29 = tpu.matmul %27, %28, %cst_17 {dimension_numbers = #tpu.dot_dimension_numbers<[1], [0], [0], [1], [0, 0, 1, 1], [], []>} : vector<1x64xf32>, vector<64x32xf32>, vector<1x32xf32> -> vector<1x32xf32>
    %30 = arith.addf %29, %2 : vector<1x32xf32>
    %cst_18 = arith.constant 0.000000e+00 : f32
    %31 = vector.broadcast %cst_18 : f32 to vector<1x32xf32>
    %32 = arith.maximumf %30, %31 : vector<1x32xf32>
    %33 = tpu.concatenate %32, %5 in 1 : vector<1x32xf32>, vector<1x32xf32> -> vector<1x64xf32>
    %c0_19 = arith.constant 0 : index
    %c0_20 = arith.constant 0 : index
    %34 = vector.load %arg3[%c0_19, %c0_20] : memref<64x384xf32, #tpu.memory_space<vmem>>, vector<64x128xf32>
    %cst_21 = arith.constant dense<0.000000e+00> : vector<1x128xf32>
    %35 = tpu.matmul %33, %34, %cst_21 {dimension_numbers = #tpu.dot_dimension_numbers<[1], [0], [0], [1], [0, 0, 1, 1], [], []>} : vector<1x64xf32>, vector<64x128xf32>, vector<1x128xf32> -> vector<1x128xf32>
    %36 = arith.addf %35, %0 : vector<1x128xf32>
    %37 = arith.negf %36 : vector<1x128xf32>
    %38 = math.exp %37 : vector<1x128xf32>
    %cst_22 = arith.constant 1.000000e+00 : f32
    %39 = vector.broadcast %cst_22 : f32 to vector<1x128xf32>
    %40 = arith.addf %39, %38 : vector<1x128xf32>
    %41 = arith.divf %39, %40 : vector<1x128xf32>
    %42 = math.tanh %36 : vector<1x128xf32>
    %43 = vector.extract_strided_slice %41 {offsets = [0, 0], sizes = [1, 32], strides = [1, 1]} : vector<1x128xf32> to vector<1x32xf32>
    %44 = vector.extract_strided_slice %41 {offsets = [0, 32], sizes = [1, 32], strides = [1, 1]} : vector<1x128xf32> to vector<1x32xf32>
    %45 = vector.extract_strided_slice %42 {offsets = [0, 64], sizes = [1, 32], strides = [1, 1]} : vector<1x128xf32> to vector<1x32xf32>
    %46 = vector.extract_strided_slice %41 {offsets = [0, 96], sizes = [1, 32], strides = [1, 1]} : vector<1x128xf32> to vector<1x32xf32>
    %47 = arith.mulf %44, %6 : vector<1x32xf32>
    %48 = arith.mulf %43, %45 : vector<1x32xf32>
    %49 = arith.addf %47, %48 : vector<1x32xf32>
    %50 = math.tanh %49 : vector<1x32xf32>
    %51 = arith.mulf %46, %50 : vector<1x32xf32>
    %c0_23 = arith.constant 0 : index
    %c0_24 = arith.constant 0 : index
    %52 = vector.load %arg4[%c0_23, %c0_24] : memref<32x64xf32, #tpu.memory_space<vmem>>, vector<32x64xf32>
    %cst_25 = arith.constant dense<0.000000e+00> : vector<1x64xf32>
    %53 = tpu.matmul %51, %52, %cst_25 {dimension_numbers = #tpu.dot_dimension_numbers<[1], [0], [0], [1], [0, 0, 1, 1], [], []>} : vector<1x32xf32>, vector<32x64xf32>, vector<1x64xf32> -> vector<1x64xf32>
    %54 = arith.addf %53, %1 : vector<1x64xf32>
    %cst_26 = arith.constant dense<0xFF800000> : vector<1xf32>
    %55 = vector.multi_reduction <maximumf>, %54, %cst_26 [1] : vector<1x64xf32> to vector<1xf32>
    %56 = vector.shape_cast %55 : vector<1xf32> to vector<1x1xf32>
    %57 = vector.broadcast %56 : vector<1x1xf32> to vector<1x64xf32>
    %58 = arith.subf %54, %57 : vector<1x64xf32>
    %59 = math.exp %58 : vector<1x64xf32>
    %cst_27 = arith.constant dense<0.000000e+00> : vector<1xf32>
    %60 = vector.multi_reduction <add>, %59, %cst_27 [1] : vector<1x64xf32> to vector<1xf32>
    %61 = vector.shape_cast %60 : vector<1xf32> to vector<1x1xf32>
    %62 = math.log %61 : vector<1x1xf32>
    %63 = vector.broadcast %62 : vector<1x1xf32> to vector<1x64xf32>
    %64 = arith.subf %58, %63 : vector<1x64xf32>
    %cst_28 = arith.constant 0.000000e+00 : f32
    %65 = vector.broadcast %cst_28 : f32 to vector<1x112xf32>
    %66 = tpu.concatenate %64, %51, %49, %25, %65 in 1 : vector<1x64xf32>, vector<1x32xf32>, vector<1x32xf32>, vector<1x16xf32>, vector<1x112xf32> -> vector<1x256xf32>
    %c0_29 = arith.constant 0 : index
    %c0_30 = arith.constant 0 : index
    %67 = vector.load %arg6[%c0_29, %c0_30] : memref<1x256xf32, #tpu.memory_space<vmem>>, vector<1x256xf32>
    tpu.vector_store %arg6[%c0_29, %c0_30], %66 {strides = array<i32>} : memref<1x256xf32, #tpu.memory_space<vmem>>, vector<1x256xf32>,
    return
  }
}

</mosaic_0001>

<llo_original>
// kernel: attention_decoder_decode.1
$region0: #{attention_decoder_decode.1}
  #allocation0 [shape = 'u32[]', space=smem, size = 0x4, offset = 0x4, fixed_abs, tag = 'smem constant byte address 0x4 - core index']
  #allocation1 [shape = 'u32[144,128]{1,0:T(1,128)}', space=vmem, size = 0x12000, scoped, tag = 'internal scratch']
  #allocation2 [shape = 's32[1]{0:T(128)S(6)}', space=smem, size = 0x200, scoped, tag = 'scoped memory for attention_decoder_decode.1']
  %s0 = inlined_call_operand.<no memory space> [shape: s32[1], index: 0, kind: input, shape index: {}]
  %s1 = inlined_call_operand.vmem [shape: f32[64,32], index: 1, kind: input, shape index: {}]
  %s2 = inlined_call_operand.vmem [shape: f32[18,32], index: 2, kind: input, shape index: {}]
  %s3 = inlined_call_operand.vmem [shape: f32[64,384], index: 3, kind: input, shape index: {}]
  %s4 = inlined_call_operand.vmem [shape: f32[32,64], index: 4, kind: input, shape index: {}]
  %s5 = inlined_call_operand.vmem [shape: f32[1,512], index: 5, kind: input, shape index: {}]
  %s6 = inlined_call_operand.vmem [shape: f32[1,256], index: 6, kind: output, shape index: {}]
  %s7 = sld [smem:[#allocation0]]
  $region34: #{attention_decoder_decode.1} parent=0
    _
  %s9 = ssub.s32 1, %s7
  %s10 = scalar_select 0, %s9, %s7
  %11 = sst [smem:[#allocation2]] %s0
  // Predicated region
  $region2: #{attention_decoder_decode.1} parent=0 // pred_check
    _
  $region3: #{attention_decoder_decode.1} parent=0 // pred_check_branch
    %13 = sbr.rel (0) target = $region5
  $region4: #{attention_decoder_decode.1} parent=0 // pred_region
    _
  $region5: #{attention_decoder_decode.1} parent=0 // pred_fallthru
    _
  // Predicated region
  $region6: #{attention_decoder_decode.1} parent=0 // pred_check
    _
  $region7: #{attention_decoder_decode.1} parent=0 // pred_check_branch
    %15 = sbr.rel (0) target = $region9
  $region8: #{attention_decoder_decode.1} parent=0 // pred_region
    _
  $region9: #{attention_decoder_decode.1} parent=0 // pred_fallthru
    _
  // Predicated region
  $region10: #{attention_decoder_decode.1} parent=0 // pred_check
    _
  $region11: #{attention_decoder_decode.1} parent=0 // pred_check_branch
    %17 = sbr.rel (0) target = $region13
  $region12: #{attention_decoder_decode.1} parent=0 // pred_region
    _
  $region13: #{attention_decoder_decode.1} parent=0 // pred_fallthru
    _
  // Predicated region
  $region14: #{attention_decoder_decode.1} parent=0 // pred_check
    _
  $region15: #{attention_decoder_decode.1} parent=0 // pred_check_branch
    %19 = sbr.rel (0) target = $region17
  $region16: #{attention_decoder_decode.1} parent=0 // pred_region
    _
  $region17: #{attention_decoder_decode.1} parent=0 // pred_fallthru
    _
  // Predicated region
  $region18: #{attention_decoder_decode.1} parent=0 // pred_check
    _
  $region19: #{attention_decoder_decode.1} parent=0 // pred_check_branch
    %21 = sbr.rel (0) target = $region21
  $region20: #{attention_decoder_decode.1} parent=0 // pred_region
    _
  $region21: #{attention_decoder_decode.1} parent=0 // pred_fallthru
    _
  // Predicated region
  $region22: #{attention_decoder_decode.1} parent=0 // pred_check
    _
  $region23: #{attention_decoder_decode.1} parent=0 // pred_check_branch
    %23 = sbr.rel (0) target = $region25
  $region24: #{attention_decoder_decode.1} parent=0 // pred_region
    _
  $region25: #{attention_decoder_decode.1} parent=0 // pred_fallthru
    _
  %v24 = vld [vmem:[%s5] sm:$0x1]
  %v25 = vld [vmem:[%s5 + $0x1] sm:$0x1]
  %v26 = vld [vmem:[%s5 + $0x2] sm:$0x1]
  %v27 = vld [vmem:[%s5 + $0x3] sm:$0x1]
  %v28 = vld [vmem:[%s2] sm:$0xff]
  %v29 = vld [vmem:[%s2 + $0x8] sm:$0xff]
  %v30 = vld [vmem:[%s2 + $0x10] sm:$0x1]
  %v31 = vld [vmem:[%s2 + $0x11] sm:$0x1]
  %s32 = sld [smem:[#allocation2]]
  %p33 = scmp.gt.s32.totalorder %s32, 0
  %s34 = scalar_select %p33, %s32, 0
  %p35 = scmp.lt.s32.totalorder %s34, 63
  %s36 = scalar_select %p35, %s34, 63
  %s37 = scalar_lea.vmem %s1, %s36
  %v38 = vld [vmem:[%s37] sm:$0x1]
  %40 = vrot.lane.b32.xlu0 %v30, 32
  %v41 = vpop.permute.xlu0 %40
  %vm43 = vcmask 261120
  %v44 = vsel %vm43, %v38, %v41
  %v45 = vld [vmem:[%s3 + $0x8] sm:$0xff]
  %v46 = vld [vmem:[%s3 + $0x20] sm:$0xff]
  %v47 = vld [vmem:[%s3 + $0x38] sm:$0xff]
  %v48 = vld [vmem:[%s3 + $0x50] sm:$0xff]
  %v49 = vld [vmem:[%s3 + $0x68] sm:$0xff]
  %v50 = vld [vmem:[%s3 + $0x80] sm:$0xff]
  %v51 = vld [vmem:[%s3 + $0x98] sm:$0xff]
  %v52 = vld [vmem:[%s3 + $0xb0] sm:$0xff]
  %vm53 = vcmask 523264
  %v55 = vsel %vm53, %v44, 0
  %57 = vmatprep.subr.mxu0 0.0
  %58 = vmatpush1.msra.mxu0 %v45
  %59 = vmatprep.subr.mxu0 0.0
  %60 = vmatpush1.msra.mxu0 %v46
  %61 = vmatprep.subr.mxu0 0.0
  %62 = vmatpush1.msra.mxu0 %v47
  %63 = vmatprep.subr.mxu0 0.0
  %64 = vmatpush1.msra.mxu0 %v48
  %65 = vmatprep.subr.mxu0 0.0
  %66 = vmatpush1.msra.mxu0 %v49
  %67 = vmatprep.subr.mxu0 0.0
  %68 = vmatpush1.msra.mxu0 %v50
  %69 = vmatprep.subr.mxu0 0.0
  %70 = vmatpush1.msra.mxu0 %v51
  %71 = vmatprep.subr.mxu0 0.0
  %72 = vmatpush1.msra.mxu0 %v52
  %73 = vmatprep.subr.mxu0 0.0
  %74 = vmatpush1.msra.mxu0 0.0
  %75 = vmatprep.subr.mxu0 0.0
  %76 = vmatpush1.msra.mxu0 0.0
  %77 = vmatprep.subr.mxu0 0.0
  %78 = vmatpush1.msra.mxu0 0.0
  %79 = vmatprep.subr.mxu0 0.0
  %80 = vmatpush1.msra.mxu0 0.0
  %81 = vmatprep.subr.mxu0 0.0
  %82 = vmatpush1.msra.mxu0 0.0
  %83 = vmatprep.subr.mxu0 0.0
  %84 = vmatpush1.msra.mxu0 0.0
  %85 = vmatprep.subr.mxu0 0.0
  %86 = vmatpush1.msra.mxu0 0.0
  %87 = vmatprep.subr.mxu0 0.0
  %88 = vmatpush1.msra.mxu0 0.0
  %89 = vmatprep.subr.mxu0 0.0
  %90 = vmatpush1.msra.mxu0 0.0
  %91 = vmatprep.subr.mxu0 0.0
  %92 = vmatpush1.msra.mxu0 0.0
  %93 = vmatprep.subr.mxu0 0.0
  %94 = vmatpush1.msra.mxu0 0.0
  %95 = vmatprep.subr.mxu0 0.0
  %96 = vmatpush1.msra.mxu0 0.0
  %97 = vmatprep.subr.mxu0 0.0
  %98 = vmatpush1.msra.mxu0 0.0
  %99 = vmatprep.subr.mxu0 0.0
  %100 = vmatpush1.msra.mxu0 0.0
  %101 = vmatprep.subr.mxu0 0.0
  %102 = vmatpush1.msra.mxu0 0.0
  %103 = vmatprep.subr.mxu0 0.0
  %104 = vmatpush1.msra.mxu0 0.0
  %105 = vmatprep.subr.mxu0 0.0
  %106 = vmatpush1.msra.mxu0 0.0
  %107 = vmatprep.subr.mxu0 0.0
  %108 = vmatpush1.msra.mxu0 0.0
  %109 = vmatprep.subr.mxu0 0.0
  %110 = vmatpush1.msra.mxu0 0.0
  %111 = vmatprep.subr.mxu0 0.0
  %112 = vmatpush1.msra.mxu0 0.0
  %113 = vmatprep.subr.mxu0 0.0
  %114 = vmatpush1.msra.mxu0 0.0
  %115 = vmatprep.subr.mxu0 0.0
  %116 = vmatpush1.msra.mxu0 0.0
  %117 = vmatprep.subr.mxu0 0.0
  %118 = vmatpush1.msra.mxu0 0.0
  %119 = vmatprep.subr.mxu0 0.0
  %120 = vmatpush1.msra.mxu0 0.0
  %121 = vmatprep.mubr.f32.mxu0 0.0
  %122 = vmatmul.mubr.f32.gmra.mrb[0].mxu0 %v55
  %v123 = vpop.f32.mrb[0].mxu0
  %v124 = vadd.f32 %v27, %v123
  %v125 = vpop.f32.mrb[0].mxu0
  %126 = vdwg.mxu0
  %vm127 = vcmask 122880
  %v128 = vsel %vm127, %v124, -inf
  %129 = vmax.xlane.f32.xlu0 %v128
  %v130 = vpop.xlane.xlu0 %129
  %v131 = vsub.f32 %v124, %v130
  %v132 = vmul.f32 %v131, 1.442695
  %v133 = vpow.pop %v132
  %v134 = vsel %vm127, %v133, 0.0
  %135 = vadd.xlane.f32.xlu0 %v134
  %v136 = vpop.xlane.xlu0 %135
  %v137 = vrcp.pop %v136
  %v138 = vmul.f32 %v133, %v137
  %vm139 = vcmask 130048
  %v141 = vsel %vm139, %v138, 0
  %143 = vmatprep.subr.mxu0 0.0
  %144 = vmatpush1.msra.mxu0 %v28
  %145 = vmatprep.subr.mxu0 0.0
  %146 = vmatpush1.msra.mxu0 %v29
  %147 = vmatprep.subr.mxu0 0.0
  %148 = vmatpush1.msra.mxu0 0.0
  %149 = vmatprep.subr.mxu0 0.0
  %150 = vmatpush1.msra.mxu0 0.0
  %151 = vmatprep.subr.mxu0 0.0
  %152 = vmatpush1.msra.mxu0 0.0
  %153 = vmatprep.subr.mxu0 0.0
  %154 = vmatpush1.msra.mxu0 0.0
  %155 = vmatprep.subr.mxu0 0.0
  %156 = vmatpush1.msra.mxu0 0.0
  %157 = vmatprep.subr.mxu0 0.0
  %158 = vmatpush1.msra.mxu0 0.0
  %159 = vmatprep.subr.mxu0 0.0
  %160 = vmatpush1.msra.mxu0 0.0
  %161 = vmatprep.subr.mxu0 0.0
  %162 = vmatpush1.msra.mxu0 0.0
  %163 = vmatprep.subr.mxu0 0.0
  %164 = vmatpush1.msra.mxu0 0.0
  %165 = vmatprep.subr.mxu0 0.0
  %166 = vmatpush1.msra.mxu0 0.0
  %167 = vmatprep.subr.mxu0 0.0
  %168 = vmatpush1.msra.mxu0 0.0
  %169 = vmatprep.subr.mxu0 0.0
  %170 = vmatpush1.msra.mxu0 0.0
  %171 = vmatprep.subr.mxu0 0.0
  %172 = vmatpush1.msra.mxu0 0.0
  %173 = vmatprep.subr.mxu0 0.0
  %174 = vmatpush1.msra.mxu0 0.0
  %175 = vmatprep.subr.mxu0 0.0
  %176 = vmatpush1.msra.mxu0 0.0
  %177 = vmatprep.subr.mxu0 0.0
  %178 = vmatpush1.msra.mxu0 0.0
  %179 = vmatprep.subr.mxu0 0.0
  %180 = vmatpush1.msra.mxu0 0.0
  %181 = vmatprep.subr.mxu0 0.0
  %182 = vmatpush1.msra.mxu0 0.0
  %183 = vmatprep.subr.mxu0 0.0
  %184 = vmatpush1.msra.mxu0 0.0
  %185 = vmatprep.subr.mxu0 0.0
  %186 = vmatpush1.msra.mxu0 0.0
  %187 = vmatprep.subr.mxu0 0.0
  %188 = vmatpush1.msra.mxu0 0.0
  %189 = vmatprep.subr.mxu0 0.0
  %190 = vmatpush1.msra.mxu0 0.0
  %191 = vmatprep.subr.mxu0 0.0
  %192 = vmatpush1.msra.mxu0 0.0
  %193 = vmatprep.subr.mxu0 0.0
  %194 = vmatpush1.msra.mxu0 0.0
  %195 = vmatprep.subr.mxu0 0.0
  %196 = vmatpush1.msra.mxu0 0.0
  %197 = vmatprep.subr.mxu0 0.0
  %198 = vmatpush1.msra.mxu0 0.0
  %199 = vmatprep.subr.mxu0 0.0
  %200 = vmatpush1.msra.mxu0 0.0
  %201 = vmatprep.subr.mxu0 0.0
  %202 = vmatpush1.msra.mxu0 0.0
  %203 = vmatprep.subr.mxu0 0.0
  %204 = vmatpush1.msra.mxu0 0.0
  %205 = vmatprep.subr.mxu0 0.0
  %206 = vmatpush1.msra.mxu0 0.0
  %207 = vmatprep.mubr.f32.mxu0 0.0
  %208 = vmatmul.mubr.f32.gmra.mrb[0].mxu0 %v141
  %v209 = vpop.f32.mrb[0].mxu0
  %v210 = vadd.f32 0.0, %v209
  %v211 = vpop.f32.mrb[0].mxu0
  %212 = vdwg.mxu0
  %214 = vrot.lane.b32.xlu0 %v210, 32
  %v215 = vpop.permute.xlu0 %214
  %v217 = vsel %vm43, %v38, %v215
  %v218 = vld [vmem:[%s3 + $0x10] sm:$0xff]
  %v219 = vld [vmem:[%s3 + $0x28] sm:$0xff]
  %v220 = vld [vmem:[%s3 + $0x40] sm:$0xff]
  %v221 = vld [vmem:[%s3 + $0x58] sm:$0xff]
  %v222 = vld [vmem:[%s3 + $0x70] sm:$0xff]
  %v223 = vld [vmem:[%s3 + $0x88] sm:$0xff]
  %v224 = vld [vmem:[%s3 + $0xa0] sm:$0xff]
  %v225 = vld [vmem:[%s3 + $0xb8] sm:$0xff]
  %v227 = vsel %vm53, %v217, 0
  %229 = vmatprep.subr.mxu0 0.0
  %230 = vmatpush1.msra.mxu0 %v218
  %231 = vmatprep.subr.mxu0 0.0
  %232 = vmatpush1.msra.mxu0 %v219
  %233 = vmatprep.subr.mxu0 0.0
  %234 = vmatpush1.msra.mxu0 %v220
  %235 = vmatprep.subr.mxu0 0.0
  %236 = vmatpush1.msra.mxu0 %v221
  %237 = vmatprep.subr.mxu0 0.0
  %238 = vmatpush1.msra.mxu0 %v222
  %239 = vmatprep.subr.mxu0 0.0
  %240 = vmatpush1.msra.mxu0 %v223
  %241 = vmatprep.subr.mxu0 0.0
  %242 = vmatpush1.msra.mxu0 %v224
  %243 = vmatprep.subr.mxu0 0.0
  %244 = vmatpush1.msra.mxu0 %v225
  %245 = vmatprep.subr.mxu0 0.0
  %246 = vmatpush1.msra.mxu0 0.0
  %247 = vmatprep.subr.mxu0 0.0
  %248 = vmatpush1.msra.mxu0 0.0
  %249 = vmatprep.subr.mxu0 0.0
  %250 = vmatpush1.msra.mxu0 0.0
  %251 = vmatprep.subr.mxu0 0.0
  %252 = vmatpush1.msra.mxu0 0.0
  %253 = vmatprep.subr.mxu0 0.0
  %254 = vmatpush1.msra.mxu0 0.0
  %255 = vmatprep.subr.mxu0 0.0
  %256 = vmatpush1.msra.mxu0 0.0
  %257 = vmatprep.subr.mxu0 0.0
  %258 = vmatpush1.msra.mxu0 0.0
  %259 = vmatprep.subr.mxu0 0.0
  %260 = vmatpush1.msra.mxu0 0.0
  %261 = vmatprep.subr.mxu0 0.0
  %262 = vmatpush1.msra.mxu0 0.0
  %263 = vmatprep.subr.mxu0 0.0
  %264 = vmatpush1.msra.mxu0 0.0
  %265 = vmatprep.subr.mxu0 0.0
  %266 = vmatpush1.msra.mxu0 0.0
  %267 = vmatprep.subr.mxu0 0.0
  %268 = vmatpush1.msra.mxu0 0.0
  %269 = vmatprep.subr.mxu0 0.0
  %270 = vmatpush1.msra.mxu0 0.0
  %271 = vmatprep.subr.mxu0 0.0
  %272 = vmatpush1.msra.mxu0 0.0
  %273 = vmatprep.subr.mxu0 0.0
  %274 = vmatpush1.msra.mxu0 0.0
  %275 = vmatprep.subr.mxu0 0.0
  %276 = vmatpush1.msra.mxu0 0.0
  %277 = vmatprep.subr.mxu0 0.0
  %278 = vmatpush1.msra.mxu0 0.0
  %279 = vmatprep.subr.mxu0 0.0
  %280 = vmatpush1.msra.mxu0 0.0
  %281 = vmatprep.subr.mxu0 0.0
  %282 = vmatpush1.msra.mxu0 0.0
  %283 = vmatprep.subr.mxu0 0.0
  %284 = vmatpush1.msra.mxu0 0.0
  %285 = vmatprep.subr.mxu0 0.0
  %286 = vmatpush1.msra.mxu0 0.0
  %287 = vmatprep.subr.mxu0 0.0
  %288 = vmatpush1.msra.mxu0 0.0
  %289 = vmatprep.subr.mxu0 0.0
  %290 = vmatpush1.msra.mxu0 0.0
  %291 = vmatprep.subr.mxu0 0.0
  %292 = vmatpush1.msra.mxu0 0.0
  %293 = vmatprep.mubr.f32.mxu0 0.0
  %294 = vmatmul.mubr.f32.gmra.mrb[0].mxu0 %v227
  %v295 = vpop.f32.mrb[0].mxu0
  %v296 = vadd.f32 %v26, %v295
  %v297 = vpop.f32.mrb[0].mxu0
  %298 = vdwg.mxu0
  %v299 = vmax.f32 %v296, 0.0
  %v300 = vsel %vm43, %v299, %v41
  %v301 = vld [vmem:[%s3] sm:$0xff]
  %v302 = vld [vmem:[%s3 + $0x18] sm:$0xff]
  %v303 = vld [vmem:[%s3 + $0x30] sm:$0xff]
  %v304 = vld [vmem:[%s3 + $0x48] sm:$0xff]
  %v305 = vld [vmem:[%s3 + $0x60] sm:$0xff]
  %v306 = vld [vmem:[%s3 + $0x78] sm:$0xff]
  %v307 = vld [vmem:[%s3 + $0x90] sm:$0xff]
  %v308 = vld [vmem:[%s3 + $0xa8] sm:$0xff]
  %v310 = vsel %vm53, %v300, 0
  %312 = vmatprep.subr.mxu0 0.0
  %313 = vmatpush1.msra.mxu0 %v301
  %314 = vmatprep.subr.mxu0 0.0
  %315 = vmatpush1.msra.mxu0 %v302
  %316 = vmatprep.subr.mxu0 0.0
  %317 = vmatpush1.msra.mxu0 %v303
  %318 = vmatprep.subr.mxu0 0.0
  %319 = vmatpush1.msra.mxu0 %v304
  %320 = vmatprep.subr.mxu0 0.0
  %321 = vmatpush1.msra.mxu0 %v305
  %322 = vmatprep.subr.mxu0 0.0
  %323 = vmatpush1.msra.mxu0 %v306
  %324 = vmatprep.subr.mxu0 0.0
  %325 = vmatpush1.msra.mxu0 %v307
  %326 = vmatprep.subr.mxu0 0.0
  %327 = vmatpush1.msra.mxu0 %v308
  %328 = vmatprep.subr.mxu0 0.0
  %329 = vmatpush1.msra.mxu0 0.0
  %330 = vmatprep.subr.mxu0 0.0
  %331 = vmatpush1.msra.mxu0 0.0
  %332 = vmatprep.subr.mxu0 0.0
  %333 = vmatpush1.msra.mxu0 0.0
  %334 = vmatprep.subr.mxu0 0.0
  %335 = vmatpush1.msra.mxu0 0.0
  %336 = vmatprep.subr.mxu0 0.0
  %337 = vmatpush1.msra.mxu0 0.0
  %338 = vmatprep.subr.mxu0 0.0
  %339 = vmatpush1.msra.mxu0 0.0
  %340 = vmatprep.subr.mxu0 0.0
  %341 = vmatpush1.msra.mxu0 0.0
  %342 = vmatprep.subr.mxu0 0.0
  %343 = vmatpush1.msra.mxu0 0.0
  %344 = vmatprep.subr.mxu0 0.0
  %345 = vmatpush1.msra.mxu0 0.0
  %346 = vmatprep.subr.mxu0 0.0
  %347 = vmatpush1.msra.mxu0 0.0
  %348 = vmatprep.subr.mxu0 0.0
  %349 = vmatpush1.msra.mxu0 0.0
  %350 = vmatprep.subr.mxu0 0.0
  %351 = vmatpush1.msra.mxu0 0.0
  %352 = vmatprep.subr.mxu0 0.0
  %353 = vmatpush1.msra.mxu0 0.0
  %354 = vmatprep.subr.mxu0 0.0
  %355 = vmatpush1.msra.mxu0 0.0
  %356 = vmatprep.subr.mxu0 0.0
  %357 = vmatpush1.msra.mxu0 0.0
  %358 = vmatprep.subr.mxu0 0.0
  %359 = vmatpush1.msra.mxu0 0.0
  %360 = vmatprep.subr.mxu0 0.0
  %361 = vmatpush1.msra.mxu0 0.0
  %362 = vmatprep.subr.mxu0 0.0
  %363 = vmatpush1.msra.mxu0 0.0
  %364 = vmatprep.subr.mxu0 0.0
  %365 = vmatpush1.msra.mxu0 0.0
  %366 = vmatprep.subr.mxu0 0.0
  %367 = vmatpush1.msra.mxu0 0.0
  %368 = vmatprep.subr.mxu0 0.0
  %369 = vmatpush1.msra.mxu0 0.0
  %370 = vmatprep.subr.mxu0 0.0
  %371 = vmatpush1.msra.mxu0 0.0
  %372 = vmatprep.subr.mxu0 0.0
  %373 = vmatpush1.msra.mxu0 0.0
  %374 = vmatprep.subr.mxu0 0.0
  %375 = vmatpush1.msra.mxu0 0.0
  %376 = vmatprep.mubr.f32.mxu0 0.0
  %377 = vmatmul.mubr.f32.gmra.mrb[0].mxu0 %v310
  %v378 = vpop.f32.mrb[0].mxu0
  %v379 = vadd.f32 %v24, %v378
  %v380 = vpop.f32.mrb[0].mxu0
  %381 = vdwg.mxu0
  %v382 = vxor.u32 %v379, 2147483648
  %v383 = vmul.f32 %v382, 1.442695
  %v384 = vpow.pop %v383
  %v385 = vadd.f32 %v384, 1.0
  %v386 = vrcp.pop %v385
  %v387 = vmul.f32 1.0, %v386
  %v388 = vtanh.pop %v379
  %390 = vrot.lane.b32.xlu0 %v31, 32
  %v391 = vpop.permute.xlu0 %390
  %v393 = vmul.f32 %v387, %v391
  %395 = vrot.lane.b32.xlu0 %v388, 64
  %v396 = vpop.permute.xlu0 %395
  %v398 = vmul.f32 %v387, %v396
  %400 = vrot.lane.b32.xlu0 %v398, 32
  %v401 = vpop.permute.xlu0 %400
  %v403 = vadd.f32 %v393, %v401
  %v404 = vtanh.pop %v403
  %406 = vrot.lane.b32.xlu0 %v404, 64
  %v407 = vpop.permute.xlu0 %406
  %v409 = vmul.f32 %v387, %v407
  %v410 = vld [vmem:[%s4] sm:$0xff]
  %v411 = vld [vmem:[%s4 + $0x8] sm:$0xff]
  %v412 = vld [vmem:[%s4 + $0x10] sm:$0xff]
  %v413 = vld [vmem:[%s4 + $0x18] sm:$0xff]
  %415 = vrot.lane.b32.xlu0 %v409, 32
  %v416 = vpop.permute.xlu0 %415
  %v417 = vsel %vm43, %v416, 0
  %419 = vmatprep.subr.mxu0 0.0
  %420 = vmatpush1.msra.mxu0 %v410
  %421 = vmatprep.subr.mxu0 0.0
  %422 = vmatpush1.msra.mxu0 %v411
  %423 = vmatprep.subr.mxu0 0.0
  %424 = vmatpush1.msra.mxu0 %v412
  %425 = vmatprep.subr.mxu0 0.0
  %426 = vmatpush1.msra.mxu0 %v413
  %427 = vmatprep.subr.mxu0 0.0
  %428 = vmatpush1.msra.mxu0 0.0
  %429 = vmatprep.subr.mxu0 0.0
  %430 = vmatpush1.msra.mxu0 0.0
  %431 = vmatprep.subr.mxu0 0.0
  %432 = vmatpush1.msra.mxu0 0.0
  %433 = vmatprep.subr.mxu0 0.0
  %434 = vmatpush1.msra.mxu0 0.0
  %435 = vmatprep.subr.mxu0 0.0
  %436 = vmatpush1.msra.mxu0 0.0
  %437 = vmatprep.subr.mxu0 0.0
  %438 = vmatpush1.msra.mxu0 0.0
  %439 = vmatprep.subr.mxu0 0.0
  %440 = vmatpush1.msra.mxu0 0.0
  %441 = vmatprep.subr.mxu0 0.0
  %442 = vmatpush1.msra.mxu0 0.0
  %443 = vmatprep.subr.mxu0 0.0
  %444 = vmatpush1.msra.mxu0 0.0
  %445 = vmatprep.subr.mxu0 0.0
  %446 = vmatpush1.msra.mxu0 0.0
  %447 = vmatprep.subr.mxu0 0.0
  %448 = vmatpush1.msra.mxu0 0.0
  %449 = vmatprep.subr.mxu0 0.0
  %450 = vmatpush1.msra.mxu0 0.0
  %451 = vmatprep.subr.mxu0 0.0
  %452 = vmatpush1.msra.mxu0 0.0
  %453 = vmatprep.subr.mxu0 0.0
  %454 = vmatpush1.msra.mxu0 0.0
  %455 = vmatprep.subr.mxu0 0.0
  %456 = vmatpush1.msra.mxu0 0.0
  %457 = vmatprep.subr.mxu0 0.0
  %458 = vmatpush1.msra.mxu0 0.0
  %459 = vmatprep.subr.mxu0 0.0
  %460 = vmatpush1.msra.mxu0 0.0
  %461 = vmatprep.subr.mxu0 0.0
  %462 = vmatpush1.msra.mxu0 0.0
  %463 = vmatprep.subr.mxu0 0.0
  %464 = vmatpush1.msra.mxu0 0.0
  %465 = vmatprep.subr.mxu0 0.0
  %466 = vmatpush1.msra.mxu0 0.0
  %467 = vmatprep.subr.mxu0 0.0
  %468 = vmatpush1.msra.mxu0 0.0
  %469 = vmatprep.subr.mxu0 0.0
  %470 = vmatpush1.msra.mxu0 0.0
  %471 = vmatprep.subr.mxu0 0.0
  %472 = vmatpush1.msra.mxu0 0.0
  %473 = vmatprep.subr.mxu0 0.0
  %474 = vmatpush1.msra.mxu0 0.0
  %475 = vmatprep.subr.mxu0 0.0
  %476 = vmatpush1.msra.mxu0 0.0
  %477 = vmatprep.subr.mxu0 0.0
  %478 = vmatpush1.msra.mxu0 0.0
  %479 = vmatprep.subr.mxu0 0.0
  %480 = vmatpush1.msra.mxu0 0.0
  %481 = vmatprep.subr.mxu0 0.0
  %482 = vmatpush1.msra.mxu0 0.0
  %483 = vmatprep.mubr.f32.mxu0 0.0
  %484 = vmatmul.mubr.f32.gmra.mrb[0].mxu0 %v417
  %v485 = vpop.f32.mrb[0].mxu0
  %v486 = vadd.f32 %v25, %v485
  %v487 = vpop.f32.mrb[0].mxu0
  %488 = vdwg.mxu0
  %vm489 = vcmask 516096
  %v490 = vsel %vm489, %v486, -inf
  %491 = vmax.xlane.f32.xlu0 %v490
  %v492 = vpop.xlane.xlu0 %491
  %v493 = vsub.f32 %v486, %v492
  %v494 = vmul.f32 %v493, 1.442695
  %v495 = vpow.pop %v494
  %v496 = vsel %vm489, %v495, 0.0
  %497 = vadd.xlane.f32.xlu0 %v496
  %v498 = vpop.xlane.xlu0 %497
  %v499 = vlog2.pop %v498
  %v500 = vmul.f32 %v499, 0.6931472
  %v501 = vsub.f32 %v493, %v500
  %502 = vrot.lane.b32.xlu0 %v409, 96
  %v503 = vpop.permute.xlu0 %502
  %506 = vrot.lane.b32.xlu0 %v403, 64
  %v507 = vpop.permute.xlu0 %506
  %v509 = vsel %vm53, %v501, %v503
  %vm510 = vcmask 785408
  %v511 = vsel %vm510, %v509, %v507
  %v512 = vsel %vm139, %v138, 0.0
  %v515 = vcombine.low %v511, %v512
  %v517 = vunpack.c.l.s4 1966171168
  %v518 = vunpack.c.0.s8 %v517
  %v519 = vlaneseq
  %v520 = vshrl.u32 %v519, 7
  %v521 = vsub.s32 %v518, %v520
  %v522 = vrot.slane %v515, %v521
  %v524 = vunpack.c.l.s4 1966171168
  %v525 = vunpack.c.0.s8 %v524
  %v526 = vlaneseq
  %v527 = vshrl.u32 %v526, 7
  %v528 = vsub.s32 %v525, %v527
  %v529 = vrot.slane %v522, %v528
  %v531 = vlaneseq
  %vm532 = vcmp.ge.s32.totalorder %v531, 0
  %vm533 = vcmp.lt.s32.totalorder %v531, 256
  %vm534 = vmand %vm532, %vm533
  %535 = vst.msk [vmem:[%s6] sm:$0x3] %vm534, %v529
  // Predicated region
  $region26: #{attention_decoder_decode.1} parent=0 // pred_check
    _
  $region27: #{attention_decoder_decode.1} parent=0 // pred_check_branch
    %537 = sbr.rel (0) target = $region29
  $region28: #{attention_decoder_decode.1} parent=0 // pred_region
    _
  $region29: #{attention_decoder_decode.1} parent=0 // pred_fallthru
    _
  // Predicated region
  $region30: #{attention_decoder_decode.1} parent=0 // pred_check
    _
  $region31: #{attention_decoder_decode.1} parent=0 // pred_check_branch
    %539 = sbr.rel (0) target = $region33
  $region32: #{attention_decoder_decode.1} parent=0 // pred_region
    _
  $region33: #{attention_decoder_decode.1} parent=0 // pred_fallthru
    _

</llo_original>
